<compile_context>
chip_gen: v5e
topology: v5e:2x2
jax: 0.10.0
libtpu: 0.0.40
codegen_flags: <defaults>
</compile_context>

<pallas_src>
import jax
import jax.numpy as jnp
from jax.experimental import pallas as pl
from jax.experimental.pallas import tpu as pltpu

TINY = 1e-13  # tiny_value_of_dtype(torch.float)


def _attention_kernel(h_ref, w_ref, b_ref, uw_ref, mask_ref, out_ref):
    # h_ref:    (TB*S, F_in)  bf16  -- flattened (batch_block, seq) rows
    # w_ref:    (F_in, F_out) bf16
    # b_ref:    (1, F_out)    f32
    # uw_ref:   (1, F_out)    f32
    # mask_ref: (TB, S)       f32   (1.0 = keep, 0.0 = masked)
    # out_ref:  (TB, S)       f32
    TB, S = out_ref.shape
    F_out = w_ref.shape[1]

    # u = tanh(h @ W + b): one MXU matmul over TB*S rows (bf16 in, f32 accumulate).
    u = jnp.dot(h_ref[...], w_ref[...], preferred_element_type=jnp.float32)
    u = jnp.tanh(u + b_ref[...])                              # (TB*S, F_out) f32

    # similarities = uw(u): VPU multiply + lane (XLU) reduce; do NOT use the MXU for
    # a 1-column matvec. Reshape is layout-free when S % 8 == 0 (f32 sublane tile).
    t = (u * uw_ref[...]).reshape(TB, S, F_out)
    sims = jnp.sum(t, axis=-1)                                # (TB, S) -- seq on lanes

    # masked_softmax (memory_efficient=False):
    #   softmax(vector * mask) * mask / (sum + tiny)
    mask = mask_ref[...]                                      # (TB, S)
    mv = sims * mask
    m = jnp.max(mv, axis=-1, keepdims=True)
    e = jnp.exp(mv - m)
    p = e / jnp.sum(e, axis=-1, keepdims=True)
    p = p * mask
    out_ref[...] = p / (jnp.sum(p, axis=-1, keepdims=True) + TINY)


def _pick_block_b(B, S, target_rows=1024):
    """Pick how many batch rows to process per grid step.

    Candidates are divisors of B that keep the (TB, S) / (TB*S, F) blocks
    tile-friendly (TB % 8 == 0, or TB == B for small batches). Prefer blocks that
    stay under `target_rows` matmul rows AND leave >= 2 grid steps (v7x has two
    TensorCores); otherwise just under the row target; otherwise the smallest.
    """
    cands = [tb for tb in range(1, B + 1)
             if B % tb == 0 and (tb % 8 == 0 or tb == B)]
    for pred in (lambda tb: tb * S <= target_rows and B // tb >= 2,
                 lambda tb: tb * S <= target_rows):
        ok = [tb for tb in cands if pred(tb)]
        if ok:
            return max(ok)
    return min(cands)


def attention_in_htt(h, mask, W, b, uw, *, block_b=None):
    """h: (B, S, F_in); mask: (B, S) (1=keep, 0=masked); W: (F_in, F_out); b: (F_out,); uw: (F_out,).

    Returns alpha: (B, S) f32 -- masked attention weights over the seq axis.
    """
    B, S, F_in = h.shape
    F_out = W.shape[1]

    tb = block_b if block_b is not None else _pick_block_b(B, S)
    assert B % tb == 0, "batch block must divide B"
    grid = (B // tb,)
    rows = tb * S

    # bf16 MXU inputs, f32 everything else. Flatten (B, S) -> rows in the wrapper
    # (free XLA reshape) so the kernel's big matmul is a plain 2-D dot.
    h2 = h.reshape(B * S, F_in).astype(jnp.bfloat16)
    w2 = W.astype(jnp.bfloat16)
    b2 = b.reshape(1, F_out).astype(jnp.float32)
    uw2 = uw.reshape(1, F_out).astype(jnp.float32)
    mask2 = mask.astype(jnp.float32)

    cost = pl.CostEstimate(
        flops=2 * B * S * F_in * F_out + 10 * B * S * F_out + 12 * B * S,
        transcendentals=B * S * (F_out + 1),                 # tanh + exp
        bytes_accessed=(B * S * F_in * 2 + F_in * F_out * 2  # h, W (bf16)
                        + 2 * F_out * 4 + 2 * B * S * 4),    # b, uw, mask, out (f32)
    )

    # VMEM budget: double-buffered streaming blocks + resident params + f32 temps,
    # with 2x headroom, clamped to stay well inside v7x's 64 MiB physical VMEM.
    block_bytes = (2 * rows * F_in * 2          # h blocks (bf16, double-buffered)
                   + 2 * 2 * tb * S * 4         # mask + out blocks (f32, x2 buffers)
                   + 2 * F_in * F_out * 2       # W (bf16, pipelined copies)
                   + 2 * 2 * F_out * 4)         # b, uw
    temp_bytes = 4 * rows * F_out * 4           # u / t / reshaped temporaries (f32)
    vmem_limit = int(min(max(2 * (block_bytes + temp_bytes), 8 << 20), 48 << 20))

    out = pl.pallas_call(
        _attention_kernel,
        out_shape=jax.ShapeDtypeStruct((B, S), jnp.float32),
        grid_spec=pltpu.PrefetchScalarGridSpec(
            num_scalar_prefetch=0,
            grid=grid,
            in_specs=[
                pl.BlockSpec((rows, F_in), lambda i: (i, 0)),     # h rows for this block
                pl.BlockSpec((F_in, F_out), lambda i: (0, 0)),    # W (constant index)
                pl.BlockSpec((1, F_out), lambda i: (0, 0)),       # bias
                pl.BlockSpec((1, F_out), lambda i: (0, 0)),       # uw
                pl.BlockSpec((tb, S), lambda i: (i, 0)),          # mask (lane-dense)
            ],
            out_specs=pl.BlockSpec((tb, S), lambda i: (i, 0)),    # alpha (lane-dense)
        ),
        compiler_params=pltpu.CompilerParams(
            dimension_semantics=("parallel",),
            vmem_limit_bytes=vmem_limit,
        ),
        cost_estimate=cost,
    )(h2, w2, b2, uw2, mask2)

    return out


def _reference(h, mask, W, b, uw):
    # Pure-JAX reference of AttentionInHtt.forward (softmax=True branch).
    u = jnp.tanh(jnp.einsum("bsf,fo->bso", h, W) + b)
    sims = jnp.einsum("bso,o->bs", u, uw)
    maskf = mask.astype(jnp.float32)
    mv = sims * maskf
    p = jax.nn.softmax(mv, axis=-1) * maskf
    return p / (jnp.sum(p, axis=-1, keepdims=True) + TINY)


if __name__ == "__main__":
    key = jax.random.PRNGKey(0)
    B, S, F_in, F_out = 2, 8, 32, 32

    k_h, k_w, k_b, k_u, k_m = jax.random.split(key, 5)
    h = jax.random.normal(k_h, (B, S, F_in), dtype=jnp.float32)
    # Deterministic parameter init (synthetic, not a checkpoint load).
    W = jax.random.normal(k_w, (F_in, F_out), dtype=jnp.float32) * 0.1
    b = jax.random.normal(k_b, (F_out,), dtype=jnp.float32) * 0.1
    uw = jax.random.normal(k_u, (F_out,), dtype=jnp.float32) * 0.1
    # Boolean-style mask with some masked tail positions.
    mask = (jax.random.uniform(k_m, (B, S)) > 0.3).astype(jnp.float32)
    mask = mask.at[:, 0].set(1.0)  # ensure at least one unmasked position per row

    alpha = attention_in_htt(h, mask, W, b, uw)
    alpha = jax.block_until_ready(alpha)

    # Tight check against a reference using the same bf16-rounded MXU inputs.
    h_r = h.astype(jnp.bfloat16).astype(jnp.float32)
    W_r = W.astype(jnp.bfloat16).astype(jnp.float32)
    ref_bf16 = _reference(h_r, mask, W_r, b, uw)
    assert jnp.allclose(alpha, ref_bf16, atol=1e-5, rtol=1e-5), (alpha, ref_bf16)

    # Loose sanity check against the full-precision f32 reference.
    ref_f32 = _reference(h, mask, W, b, uw)
    assert jnp.allclose(alpha, ref_f32, atol=5e-3, rtol=5e-2), (alpha, ref_f32)

    print("KERNEL_OK")
</pallas_src>

<mosaic_0001>
module attributes {stable_mosaic.version = 11 : i64} {
  func.func @_attention_kernel(%arg0: i32, %arg1: memref<16x32xbf16, #tpu.memory_space<vmem>>, %arg2: memref<32x32xbf16, #tpu.memory_space<vmem>>, %arg3: memref<1x32xf32, #tpu.memory_space<vmem>>, %arg4: memref<1x32xf32, #tpu.memory_space<vmem>>, %arg5: memref<2x8xf32, #tpu.memory_space<vmem>>, %arg6: memref<2x8xf32, #tpu.memory_space<vmem>>) attributes {dimension_semantics = [#tpu.dimension_semantics<parallel>], iteration_bounds = array<i64: 1>, scalar_prefetch = 0 : i64, scratch_operands = 0 : i64, tpu.core_type = #tpu.core_type<tc>, window_params = [{transform_indices = @transform_0, window_bounds = array<i64: 16, 32>}, {pipeline_mode = #tpu.pipeline_mode<synchronous>, transform_indices = @transform_1, window_bounds = array<i64: 32, 32>}, {pipeline_mode = #tpu.pipeline_mode<synchronous>, transform_indices = @transform_2, window_bounds = array<i64: 1, 32>}, {pipeline_mode = #tpu.pipeline_mode<synchronous>, transform_indices = @transform_3, window_bounds = array<i64: 1, 32>}, {transform_indices = @transform_4, window_bounds = array<i64: 2, 8>}, {transform_indices = @transform_5, window_bounds = array<i64: 2, 8>}]} {
    %c0 = arith.constant 0 : index
    %c0_0 = arith.constant 0 : index
    %0 = vector.load %arg1[%c0, %c0_0] : memref<16x32xbf16, #tpu.memory_space<vmem>>, vector<16x32xbf16>
    %c0_1 = arith.constant 0 : index
    %c0_2 = arith.constant 0 : index
    %1 = vector.load %arg2[%c0_1, %c0_2] : memref<32x32xbf16, #tpu.memory_space<vmem>>, vector<32x32xbf16>
    %cst = arith.constant dense<0.000000e+00> : vector<16x32xf32>
    %2 = tpu.matmul %0, %1, %cst {dimension_numbers = #tpu.dot_dimension_numbers<[1], [0], [0], [1], [0, 0, 1, 1], [], []>} : vector<16x32xbf16>, vector<32x32xbf16>, vector<16x32xf32> -> vector<16x32xf32>
    %c0_3 = arith.constant 0 : index
    %c0_4 = arith.constant 0 : index
    %3 = vector.load %arg3[%c0_3, %c0_4] : memref<1x32xf32, #tpu.memory_space<vmem>>, vector<1x32xf32>
    %4 = vector.broadcast %3 : vector<1x32xf32> to vector<16x32xf32>
    %5 = arith.addf %2, %4 : vector<16x32xf32>
    %6 = math.tanh %5 : vector<16x32xf32>
    %c0_5 = arith.constant 0 : index
    %c0_6 = arith.constant 0 : index
    %7 = vector.load %arg4[%c0_5, %c0_6] : memref<1x32xf32, #tpu.memory_space<vmem>>, vector<1x32xf32>
    %8 = vector.broadcast %7 : vector<1x32xf32> to vector<16x32xf32>
    %9 = arith.mulf %6, %8 : vector<16x32xf32>
    %10 = vector.shape_cast %9 : vector<16x32xf32> to vector<2x8x32xf32>
    %cst_7 = arith.constant dense<0.000000e+00> : vector<2x8xf32>
    %11 = vector.multi_reduction <add>, %10, %cst_7 [2] : vector<2x8x32xf32> to vector<2x8xf32>
    %c0_8 = arith.constant 0 : index
    %c0_9 = arith.constant 0 : index
    %12 = vector.load %arg5[%c0_8, %c0_9] : memref<2x8xf32, #tpu.memory_space<vmem>>, vector<2x8xf32>
    %13 = arith.mulf %11, %12 : vector<2x8xf32>
    %cst_10 = arith.constant dense<0xFF800000> : vector<2xf32>
    %14 = vector.multi_reduction <maximumf>, %13, %cst_10 [1] : vector<2x8xf32> to vector<2xf32>
    %15 = vector.shape_cast %14 : vector<2xf32> to vector<2x1xf32>
    %16 = vector.broadcast %15 : vector<2x1xf32> to vector<2x8xf32>
    %17 = arith.subf %13, %16 : vector<2x8xf32>
    %18 = math.exp %17 : vector<2x8xf32>
    %cst_11 = arith.constant dense<0.000000e+00> : vector<2xf32>
    %19 = vector.multi_reduction <add>, %18, %cst_11 [1] : vector<2x8xf32> to vector<2xf32>
    %20 = vector.shape_cast %19 : vector<2xf32> to vector<2x1xf32>
    %21 = vector.broadcast %20 : vector<2x1xf32> to vector<2x8xf32>
    %22 = arith.divf %18, %21 : vector<2x8xf32>
    %23 = arith.mulf %22, %12 : vector<2x8xf32>
    %cst_12 = arith.constant dense<0.000000e+00> : vector<2xf32>
    %24 = vector.multi_reduction <add>, %23, %cst_12 [1] : vector<2x8xf32> to vector<2xf32>
    %25 = vector.shape_cast %24 : vector<2xf32> to vector<2x1xf32>
    %cst_13 = arith.constant 9.99999982E-14 : f32
    %26 = vector.broadcast %cst_13 : f32 to vector<2x1xf32>
    %27 = arith.addf %25, %26 : vector<2x1xf32>
    %28 = vector.broadcast %27 : vector<2x1xf32> to vector<2x8xf32>
    %29 = arith.divf %23, %28 : vector<2x8xf32>
    %c0_14 = arith.constant 0 : index
    %c0_15 = arith.constant 0 : index
    %30 = vector.load %arg6[%c0_14, %c0_15] : memref<2x8xf32, #tpu.memory_space<vmem>>, vector<2x8xf32>
    tpu.vector_store %arg6[%c0_14, %c0_15], %29 {strides = array<i32>} : memref<2x8xf32, #tpu.memory_space<vmem>>, vector<2x8xf32>,
    return
  }
  func.func @transform_0(%arg0: i32) -> (i32, i32) {
    %c0_i32 = arith.constant 0 : i32
    %c0_i32_0 = arith.constant 0 : i32
    return %arg0, %c0_i32 : i32, i32
  }
  func.func @transform_1(%arg0: i32) -> (i32, i32) {
    %c0_i32 = arith.constant 0 : i32
    %c0_i32_0 = arith.constant 0 : i32
    %c0_i32_1 = arith.constant 0 : i32
    return %c0_i32, %c0_i32_0 : i32, i32
  }
  func.func @transform_2(%arg0: i32) -> (i32, i32) {
    %c0_i32 = arith.constant 0 : i32
    %c0_i32_0 = arith.constant 0 : i32
    %c0_i32_1 = arith.constant 0 : i32
    return %c0_i32, %c0_i32_0 : i32, i32
  }
  func.func @transform_3(%arg0: i32) -> (i32, i32) {
    %c0_i32 = arith.constant 0 : i32
    %c0_i32_0 = arith.constant 0 : i32
    %c0_i32_1 = arith.constant 0 : i32
    return %c0_i32, %c0_i32_0 : i32, i32
  }
  func.func @transform_4(%arg0: i32) -> (i32, i32) {
    %c0_i32 = arith.constant 0 : i32
    %c0_i32_0 = arith.constant 0 : i32
    return %arg0, %c0_i32 : i32, i32
  }
  func.func @transform_5(%arg0: i32) -> (i32, i32) {
    %c0_i32 = arith.constant 0 : i32
    %c0_i32_0 = arith.constant 0 : i32
    return %arg0, %c0_i32 : i32, i32
  }
}

</mosaic_0001>

<llo_original>
// kernel: tpu_custom_call.1
$region0: #{tpu_custom_call.1}
  #allocation0 [shape = 'u32[]', space=smem, size = 0x4, offset = 0x4, fixed_abs, tag = 'smem constant byte address 0x4 - core index']
  #allocation1 [shape = 'u32[72,128]{1,0:T(1,128)}', space=vmem, size = 0x9000, scoped, tag = 'internal scratch']
  %s0 = inlined_call_operand.hbm [shape: bf16[16,32], index: 0, kind: input, shape index: {}]
  %s1 = inlined_call_operand.hbm [shape: bf16[32,32], index: 1, kind: input, shape index: {}]
  %s2 = inlined_call_operand.vmem [shape: f32[1,32], index: 2, kind: input, shape index: {}]
  %s3 = inlined_call_operand.hbm [shape: f32[1,32], index: 3, kind: input, shape index: {}]
  %s4 = inlined_call_operand.vmem [shape: f32[2,8], index: 4, kind: input, shape index: {}]
  %s5 = inlined_call_operand.hbm [shape: f32[2,8], index: 5, kind: output, shape index: {}]
  %s6 = sld [smem:[#allocation0]]
  $region42: #{tpu_custom_call.1} parent=0
    _
  %s8 = ssub.s32 1, %s6
  %s9 = scalar_select 0, %s8, %s6
  $region1: #{tpu_custom_call.1} parent=0
    #allocation2 [shape = 'u8[4096]{0}', space=vmem, size = 0x1000, scoped, tag = 'input window, operand 0, single buffered']
    #allocation3 [shape = 's32[1]{0}', space=sflag, size = 0x4, scoped, tag = 'scoped memory for tpu_custom_call.1']
    #allocation4 [shape = 's32[1]{0}', space=sflag, size = 0x4, scoped, tag = 'scoped memory for tpu_custom_call.1']
    #allocation5 [shape = 'u8[8192]{0}', space=vmem, size = 0x2000, scoped, tag = 'input window, operand 1, single buffered']
    #allocation6 [shape = 's32[1]{0}', space=sflag, size = 0x4, scoped, tag = 'scoped memory for tpu_custom_call.1']
    #allocation7 [shape = 'u8[512]{0}', space=vmem, size = 0x400, scoped, tag = 'input window, operand 3, single buffered']
    #allocation8 [shape = 'u8[1024]{0}', space=vmem, size = 0x400, scoped, tag = 'output window, operand 0, single buffered']
    %10 = vsyncpa [#allocation3], 0
    %11 = vsyncpa [#allocation6], 0
    %12 = vsyncpa [#allocation4], 0
    // Predicated region
    $region2: #{tpu_custom_call.1} parent=1 // pred_check
      _
    $region3: #{tpu_custom_call.1} parent=1 // pred_check_branch
      %14 = sbr.rel (0) target = $region5
    $region4: #{tpu_custom_call.1} parent=1 // pred_region
      %16 = vsyncadd [#allocation3], 0
      %s17 = sshll.u32 %s0, 4
      %s18 = int_to_ptr.hbm [resolvable:$true] %s17
      %s19 = sshll.u32 [#allocation2], 4
      %s20 = int_to_ptr.vmem [resolvable:$true] %s19
      %25 = dma.hbm_to_vmem [thread:$0]  %s18, 128, %s20, [#allocation3], 64, 64, 4
    $region5: #{tpu_custom_call.1} parent=1 // pred_fallthru
      _
    // Predicated region
    $region6: #{tpu_custom_call.1} parent=1 // pred_check
      _
    $region7: #{tpu_custom_call.1} parent=1 // pred_check_branch
      %27 = sbr.rel (0) target = $region9
    $region8: #{tpu_custom_call.1} parent=1 // pred_region
      %29 = vsyncadd [#allocation6], 0
      %s30 = sshll.u32 %s1, 4
      %s31 = int_to_ptr.hbm [resolvable:$true] %s30
      %s32 = sshll.u32 [#allocation5], 4
      %s33 = int_to_ptr.vmem [resolvable:$true] %s32
      %38 = dma.hbm_to_vmem [thread:$0]  %s31, 256, %s33, [#allocation6], 64, 64, 4
    $region9: #{tpu_custom_call.1} parent=1 // pred_fallthru
      _
    // Predicated region
    $region10: #{tpu_custom_call.1} parent=1 // pred_check
      _
    $region11: #{tpu_custom_call.1} parent=1 // pred_check_branch
      %40 = sbr.rel (0) target = $region13
    $region12: #{tpu_custom_call.1} parent=1 // pred_region
      _
    $region13: #{tpu_custom_call.1} parent=1 // pred_fallthru
      _
    // Predicated region
    $region14: #{tpu_custom_call.1} parent=1 // pred_check
      _
    $region15: #{tpu_custom_call.1} parent=1 // pred_check_branch
      %42 = sbr.rel (0) target = $region17
    $region16: #{tpu_custom_call.1} parent=1 // pred_region
      %44 = vsyncadd [#allocation6], 0
      %s46 = sshll.u32 %s3, 4
      %s47 = int_to_ptr.hbm [resolvable:$true] %s46
      %s48 = sshll.u32 [#allocation7], 4
      %s49 = int_to_ptr.vmem [resolvable:$true] %s48
      %51 = dma.hbm_to_vmem [thread:$0]  %s47, 16, %s49, [#allocation6]
    $region17: #{tpu_custom_call.1} parent=1 // pred_fallthru
      _
    // Predicated region
    $region18: #{tpu_custom_call.1} parent=1 // pred_check
      _
    $region19: #{tpu_custom_call.1} parent=1 // pred_check_branch
      %53 = sbr.rel (0) target = $region21
    $region20: #{tpu_custom_call.1} parent=1 // pred_region
      _
    $region21: #{tpu_custom_call.1} parent=1 // pred_fallthru
      _
    // Predicated region
    $region22: #{tpu_custom_call.1} parent=1 // pred_check
      _
    $region23: #{tpu_custom_call.1} parent=1 // pred_check_branch
      %55 = sbr.rel (0) target = $region25
    $region24: #{tpu_custom_call.1} parent=1 // pred_region
      %57 = dma.done [#allocation3], 128
    $region25: #{tpu_custom_call.1} parent=1 // pred_fallthru
      _
    // Predicated region
    $region26: #{tpu_custom_call.1} parent=1 // pred_check
      _
    $region27: #{tpu_custom_call.1} parent=1 // pred_check_branch
      %59 = sbr.rel (0) target = $region29
    $region28: #{tpu_custom_call.1} parent=1 // pred_region
      %61 = dma.done [#allocation6], 256
    $region29: #{tpu_custom_call.1} parent=1 // pred_fallthru
      _
    // Predicated region
    $region30: #{tpu_custom_call.1} parent=1 // pred_check
      _
    $region31: #{tpu_custom_call.1} parent=1 // pred_check_branch
      %63 = sbr.rel (0) target = $region33
    $region32: #{tpu_custom_call.1} parent=1 // pred_region
      %65 = dma.done [#allocation6], 16
    $region33: #{tpu_custom_call.1} parent=1 // pred_fallthru
      _
    %v67 = vld [vmem:[#allocation2] sm:$0xf]
    %v68 = vld [vmem:[#allocation2 + $0x4] sm:$0xf]
    %v69 = vld [vmem:[#allocation5] sm:$0xf]
    %v70 = vld [vmem:[#allocation5 + $0x4] sm:$0xf]
    %v71 = vld [vmem:[#allocation5 + $0x8] sm:$0xf]
    %v72 = vld [vmem:[#allocation5 + $0xc] sm:$0xf]
    %v73 = vld [vmem:[%s2] sm:$0x1]
    %v75 = vperm.slane %v73, 0
    %v79 = vunpack.c.l.b16 %v67
    %v80 = vunpack.c.l.b16 %v68
    %v81 = vpack.c.b16 %v80, %v79
    %v86 = vunpack.c.l.b16 %v69
    %v87 = vunpack.c.l.b16 %v70
    %v88 = vunpack.c.l.b16 %v71
    %v89 = vunpack.c.l.b16 %v72
    %v90 = vpack.c.b16 %v87, %v86
    %v91 = vpack.c.b16 %v89, %v88
    %vm94 = vcmask 261120
    %v96 = vsel %vm94, %v81, 0
    %98 = vmatpush.bf16.msra.mxu0 0
    %99 = vmatpush.bf16.msra.mxu0 0
    %100 = vmatpush.bf16.msra.mxu0 0
    %101 = vmatpush.bf16.msra.mxu0 0
    %102 = vmatpush.bf16.msra.mxu0 0
    %103 = vmatpush.bf16.msra.mxu0 0
    %104 = vmatpush.bf16.msra.mxu0 %v91
    %105 = vmatpush.bf16.msra.mxu0 %v90
    %106 = vmatmul.bf16.gmra.mxu0 %v96
    %v107 = vpop.f32.mrf.mxu0
    %v108 = vadd.f32 %v75, %v107
    %v109 = vpop.f32.mrf.mxu0
    %v110 = vadd.f32 %v75, %v109
    %111 = vdwg.mxu0
    %v112 = vtanh.pop %v108
    %v113 = vtanh.pop %v110
    %v114 = vld [vmem:[#allocation7] sm:$0x1]
    %v116 = vperm.slane %v114, 0
    %v118 = vmul.f32 %v112, %v116
    %v119 = vmul.f32 %v113, %v116
    %v120 = vsel %vm94, %v118, 0.0
    %121 = vadd.xlane.f32.xlu0 %v120
    %v122 = vpop.xlane.xlu0 %121
    %v123 = vsel %vm94, %v119, 0.0
    %124 = vadd.xlane.f32.xlu0 %v123
    %v125 = vpop.xlane.xlu0 %124
    %v126 = vld [vmem:[%s4] sm:$0x3]
    %v128 = vperm.slane %v126, 0
    %v129 = vlaneseq
    %v130 = vshrl.u32 %v129, 7
    %132 = vset.pattern.permute.xlu0 %v130
    %133 = vperm.xlu0 %132, %v128
    %v134 = vpop.permute.xlu0 %133
    %v135 = vperm.slane %v126, 1
    %v136 = vlaneseq
    %v137 = vshrl.u32 %v136, 7
    %139 = vset.pattern.permute.xlu0 %v137
    %140 = vperm.xlu0 %139, %v135
    %v141 = vpop.permute.xlu0 %140
    %v144 = vmul.f32 %v122, %v134
    %v145 = vmul.f32 %v125, %v141
    %148 = vset.pattern.permute.xlu0 0
    %149 = vperm.xlu0 %148, %v144
    %v150 = vpop.permute.xlu0 %149
    %151 = vset.pattern.permute.xlu0 0
    %152 = vperm.xlu0 %151, %v145
    %v153 = vpop.permute.xlu0 %152
    %v154 = vlaneseq
    %v155 = vand.u32 %v154, 127
    %v156 = vperm.slane %v150, %v155
    %v157 = vperm.slane %v153, %v155
    %vm158 = vcmask 1041409
    %v159 = vsel %vm158, %v157, %v156
    %vm161 = vcmask 58368
    %v162 = vsel %vm161, %v159, -inf
    %163 = vmax.xlane.f32.xlu0 %v162
    %v164 = vpop.xlane.xlu0 %163
    %v166 = vperm.slane %v164, 0
    %v167 = vperm.slane %v164, 1
    %v170 = vsub.f32 %v144, %v166
    %v171 = vsub.f32 %v145, %v167
    %v172 = vmul.f32 %v170, 1.442695
    %v173 = vpow.pop %v172
    %v174 = vmul.f32 %v171, 1.442695
    %v175 = vpow.pop %v174
    %178 = vset.pattern.permute.xlu0 0
    %179 = vperm.xlu0 %178, %v173
    %v180 = vpop.permute.xlu0 %179
    %181 = vset.pattern.permute.xlu0 0
    %182 = vperm.xlu0 %181, %v175
    %v183 = vpop.permute.xlu0 %182
    %v184 = vperm.slane %v180, %v155
    %v185 = vperm.slane %v183, %v155
    %v186 = vsel %vm158, %v185, %v184
    %v188 = vsel %vm161, %v186, 0.0
    %189 = vadd.xlane.f32.xlu0 %v188
    %v190 = vpop.xlane.xlu0 %189
    %v192 = vperm.slane %v190, 0
    %v193 = vperm.slane %v190, 1
    %v196 = vrcp.pop %v192
    %v197 = vmul.f32 %v192, %v196
    %v198 = vsub.f32 1.0, %v197
    %v199 = vmul.f32 %v196, %v198
    %v200 = vadd.f32 %v196, %v199
    %vm201 = vweird.f32 %v192
    %vm202 = vweird.f32 %v196
    %vm203 = vmor %vm201, %vm202
    %v204 = vsel %vm203, %v196, %v200
    %v205 = vand.u32 2147483647, %v192
    %vm206 = vcmp.eq.f32.partialorder %v205, 8.507059e+37
    %v207 = vand.u32 %v192, 2147483648
    %v208 = vor.u32 1.1754944e-38, %v207
    %v209 = vsel %vm206, %v208, %v204
    %v210 = vmul.f32 %v173, %v209
    %v211 = vrcp.pop %v193
    %v212 = vmul.f32 %v193, %v211
    %v213 = vsub.f32 1.0, %v212
    %v214 = vmul.f32 %v211, %v213
    %v215 = vadd.f32 %v211, %v214
    %vm216 = vweird.f32 %v193
    %vm217 = vweird.f32 %v211
    %vm218 = vmor %vm216, %vm217
    %v219 = vsel %vm218, %v211, %v215
    %v220 = vand.u32 2147483647, %v193
    %vm221 = vcmp.eq.f32.partialorder %v220, 8.507059e+37
    %v222 = vand.u32 %v193, 2147483648
    %v223 = vor.u32 1.1754944e-38, %v222
    %v224 = vsel %vm221, %v223, %v219
    %v225 = vmul.f32 %v175, %v224
    %v226 = vmul.f32 %v210, %v134
    %v227 = vmul.f32 %v225, %v141
    %230 = vset.pattern.permute.xlu0 0
    %231 = vperm.xlu0 %230, %v226
    %v232 = vpop.permute.xlu0 %231
    %233 = vset.pattern.permute.xlu0 0
    %234 = vperm.xlu0 %233, %v227
    %v235 = vpop.permute.xlu0 %234
    %v236 = vperm.slane %v232, %v155
    %v237 = vperm.slane %v235, %v155
    %v238 = vsel %vm158, %v237, %v236
    %v240 = vsel %vm161, %v238, 0.0
    %241 = vadd.xlane.f32.xlu0 %v240
    %v242 = vpop.xlane.xlu0 %241
    %v243 = vadd.f32 %v242, 1e-13
    %v245 = vperm.slane %v243, 0
    %v246 = vperm.slane %v243, 1
    %v249 = vrcp.pop %v245
    %v250 = vmul.f32 %v245, %v249
    %v251 = vsub.f32 1.0, %v250
    %v252 = vmul.f32 %v249, %v251
    %v253 = vadd.f32 %v249, %v252
    %vm254 = vweird.f32 %v245
    %vm255 = vweird.f32 %v249
    %vm256 = vmor %vm254, %vm255
    %v257 = vsel %vm256, %v249, %v253
    %v258 = vand.u32 2147483647, %v245
    %vm259 = vcmp.eq.f32.partialorder %v258, 8.507059e+37
    %v260 = vand.u32 %v245, 2147483648
    %v261 = vor.u32 1.1754944e-38, %v260
    %v262 = vsel %vm259, %v261, %v257
    %v263 = vmul.f32 %v226, %v262
    %v264 = vrcp.pop %v246
    %v265 = vmul.f32 %v246, %v264
    %v266 = vsub.f32 1.0, %v265
    %v267 = vmul.f32 %v264, %v266
    %v268 = vadd.f32 %v264, %v267
    %vm269 = vweird.f32 %v246
    %vm270 = vweird.f32 %v264
    %vm271 = vmor %vm269, %vm270
    %v272 = vsel %vm271, %v264, %v268
    %v273 = vand.u32 2147483647, %v246
    %vm274 = vcmp.eq.f32.partialorder %v273, 8.507059e+37
    %v275 = vand.u32 %v246, 2147483648
    %v276 = vor.u32 1.1754944e-38, %v275
    %v277 = vsel %vm274, %v276, %v272
    %v278 = vmul.f32 %v227, %v277
    %281 = vset.pattern.permute.xlu0 0
    %282 = vperm.xlu0 %281, %v263
    %v283 = vpop.permute.xlu0 %282
    %284 = vset.pattern.permute.xlu0 0
    %285 = vperm.xlu0 %284, %v278
    %v286 = vpop.permute.xlu0 %285
    %v287 = vperm.slane %v283, %v155
    %v288 = vperm.slane %v286, %v155
    %v289 = vsel %vm158, %v288, %v287
    %291 = vst.msk [vmem:[#allocation8] sm:$0x3] %vm161, %v289
    // Predicated region
    $region34: #{tpu_custom_call.1} parent=1 // pred_check
      _
    $region35: #{tpu_custom_call.1} parent=1 // pred_check_branch
      %293 = sbr.rel (0) target = $region37
    $region36: #{tpu_custom_call.1} parent=1 // pred_region
      %295 = vsyncadd [#allocation4], 0
      %s297 = sshll.u32 [#allocation8], 4
      %s298 = int_to_ptr.vmem [resolvable:$true] %s297
      %s299 = sshll.u32 %s5, 4
      %s300 = int_to_ptr.hbm [resolvable:$true] %s299
      %302 = dma.vmem_to_hbm [thread:$0]  %s298, 32, %s300, [#allocation4]
    $region37: #{tpu_custom_call.1} parent=1 // pred_fallthru
      _
    // Predicated region
    $region38: #{tpu_custom_call.1} parent=1 // pred_check
      _
    $region39: #{tpu_custom_call.1} parent=1 // pred_check_branch
      %304 = sbr.rel (0) target = $region41
    $region40: #{tpu_custom_call.1} parent=1 // pred_region
      %306 = dma.done [#allocation4], 32
    $region41: #{tpu_custom_call.1} parent=1 // pred_fallthru
      _
    %307 = vsyncpa [#allocation3], 1
    %308 = vsyncpa [#allocation6], 1
    %309 = vsyncpa [#allocation4], 1

</llo_original>
